<compile_context>
chip_gen: v6e
topology: v6e:2x2x1
jax: 0.10.0
libtpu: 0.0.40
codegen_flags: <defaults>
</compile_context>

<pallas_src>
import jax
import jax.numpy as jnp
from jax.experimental import pallas as pl
from jax.experimental.pallas import tpu as pltpu


LANE = 128          # TPU lane width (last-dim alignment for weights)
MAX_TILE_B = 512    # large batch tiles amortize per-grid-step overhead


def _round_up(x, m):
    return (x + m - 1) // m * m


def _pick_tile_b(B):
    # Aim for >= 2 grid steps (v7x has 2 TensorCores on the "parallel" axis)
    # while keeping tiles as large as possible (better HBM DMA utilization).
    half = _round_up(-(-B // 2), 8)           # ceil(B/2) rounded up to sublane
    return max(8, min(MAX_TILE_B, half))


def _critic_mlp_kernel(x_ref, w1_ref, b1_ref, w2_ref, b2_ref, w3t_ref, b3_ref,
                       out_ref):
    # fc1 + ReLU  (MXU matmul, f32 accumulate; VPU for bias + relu)
    h = jnp.dot(x_ref[...], w1_ref[...], preferred_element_type=jnp.float32)
    h = jnp.maximum(h + b1_ref[...], 0.0)
    # fc2 + ReLU
    h = jnp.dot(h, w2_ref[...], preferred_element_type=jnp.float32)
    h = jnp.maximum(h + b2_ref[...], 0.0)
    # fc3: single real output column -> VPU multiply + lane reduction (XLU)
    # instead of a 128x zero-padded MXU matmul.  Padded lanes of h / w3t are 0.
    o = jnp.sum(h * w3t_ref[...], axis=-1, keepdims=True) + b3_ref[...]
    out_ref[...] = o.astype(out_ref.dtype)


def prepare_critic_params(w1, b1, w2, b2, w3, b3):
    """Zero-pad the (static) parameters to lane width ONCE, outside the
    per-call path.  Returns a tuple to pass to critic_net_forward."""
    S, H = w1.shape
    H2 = w2.shape[1]
    assert w3.shape[1] == 1, "CriticNet.fc3 has a single output unit"
    f32 = jnp.float32
    Hp, H2p = _round_up(H, LANE), _round_up(H2, LANE)

    w1p = jnp.zeros((S, Hp), f32).at[:, :H].set(w1.astype(f32))
    b1p = jnp.zeros((1, Hp), f32).at[0, :H].set(b1.astype(f32))
    w2p = jnp.zeros((Hp, H2p), f32).at[:H, :H2].set(w2.astype(f32))
    b2p = jnp.zeros((1, H2p), f32).at[0, :H2].set(b2.astype(f32))
    # fc3 weight kept as a (1, H2p) row for the in-kernel lane reduction.
    w3tp = jnp.zeros((1, H2p), f32).at[0, :H2].set(w3[:, 0].astype(f32))
    b3p = jnp.reshape(b3.astype(f32), (1, 1))
    return (w1p, b1p, w2p, b2p, w3tp, b3p)


@jax.jit
def critic_net_forward(x, params):
    """CriticNet.forward: fc3(relu(fc2(relu(fc1(x))))) via one Pallas kernel."""
    w1p, b1p, w2p, b2p, w3tp, b3p = params
    B, S = x.shape
    Hp = w1p.shape[1]
    H2p = w2p.shape[1]

    tile_b = _pick_tile_b(B)
    Bp = _round_up(B, tile_b)

    f32 = jnp.float32
    xp = jnp.pad(x.astype(f32), ((0, Bp - B), (0, 0)))   # batch pad only

    grid = (Bp // tile_b,)

    # Batch-tiled activation stream at its real feature width S (last block
    # dim == full array dim), narrow (Bp, 1) output; weights/biases resident.
    x_spec = pl.BlockSpec((tile_b, S), lambda i: (i, 0))
    out_spec = pl.BlockSpec((tile_b, 1), lambda i: (i, 0))

    def resident(shape):
        return pl.BlockSpec(shape, lambda i: (0, 0))

    out_p = pl.pallas_call(
        _critic_mlp_kernel,
        out_shape=jax.ShapeDtypeStruct((Bp, 1), f32),
        grid=grid,
        in_specs=[
            x_spec,
            resident((S, Hp)), resident((1, Hp)),
            resident((Hp, H2p)), resident((1, H2p)),
            resident((1, H2p)), resident((1, 1)),
        ],
        out_specs=out_spec,
        compiler_params=pltpu.CompilerParams(
            dimension_semantics=("parallel",),
        ),
    )(xp, w1p, b1p, w2p, b2p, w3tp, b3p)

    # Strip batch padding.
    return out_p[:B].astype(x.dtype)


if __name__ == "__main__":
    # LunarLander-v2-ish sizes: state=8, hidden=64, hidden//2=32, out=1.
    # Batch of 200 -> tile_b=104, grid of 2 tiles, padded batch of 208
    # (exercises the batch-padding and multi-tile paths) while staying small.
    key = jax.random.PRNGKey(0)
    ks = jax.random.split(key, 7)

    B, S, H = 200, 8, 64
    H2, O = H // 2, 1

    x = jax.random.normal(ks[0], (B, S), dtype=jnp.float32)
    w1 = jax.random.normal(ks[1], (S, H), dtype=jnp.float32) / jnp.sqrt(S)
    b1 = jax.random.normal(ks[2], (H,), dtype=jnp.float32) * 0.1
    w2 = jax.random.normal(ks[3], (H, H2), dtype=jnp.float32) / jnp.sqrt(H)
    b2 = jax.random.normal(ks[4], (H2,), dtype=jnp.float32) * 0.1
    w3 = jax.random.normal(ks[5], (H2, O), dtype=jnp.float32) / jnp.sqrt(H2)
    b3 = jax.random.normal(ks[6], (O,), dtype=jnp.float32) * 0.1

    params = prepare_critic_params(w1, b1, w2, b2, w3, b3)   # pad ONCE
    out = critic_net_forward(x, params)
    out = jax.block_until_ready(out)

    # Pure-JAX reference of the PyTorch forward.
    h = jnp.maximum(x @ w1 + b1, 0.0)
    h = jnp.maximum(h @ w2 + b2, 0.0)
    ref = h @ w3 + b3

    assert out.shape == (B, O), out.shape
    assert jnp.allclose(out, ref, atol=1e-5, rtol=1e-5), (
        float(jnp.max(jnp.abs(out - ref))))

    # TODO(synk): optimizer (Adam) and MSELoss are training-time constructs,
    # not part of the forward pass, so they are intentionally not kernelized.
    print("KERNEL_OK")
</pallas_src>

<mosaic_0001>
module attributes {stable_mosaic.version = 11 : i64} {
  func.func @_critic_mlp_kernel(%arg0: i32, %arg1: memref<104x8xf32, #tpu.memory_space<vmem>>, %arg2: memref<8x128xf32, #tpu.memory_space<vmem>>, %arg3: memref<1x128xf32, #tpu.memory_space<vmem>>, %arg4: memref<128x128xf32, #tpu.memory_space<vmem>>, %arg5: memref<1x128xf32, #tpu.memory_space<vmem>>, %arg6: memref<1x128xf32, #tpu.memory_space<vmem>>, %arg7: memref<1x1xf32, #tpu.memory_space<vmem>>, %arg8: memref<104x1xf32, #tpu.memory_space<vmem>>) attributes {dimension_semantics = [#tpu.dimension_semantics<parallel>], iteration_bounds = array<i64: 2>, scalar_prefetch = 0 : i64, scratch_operands = 0 : i64, tpu.core_type = #tpu.core_type<tc>, window_params = [{transform_indices = @transform_0, window_bounds = array<i64: 104, 8>}, {pipeline_mode = #tpu.pipeline_mode<synchronous>, transform_indices = @transform_1, window_bounds = array<i64: 8, 128>}, {pipeline_mode = #tpu.pipeline_mode<synchronous>, transform_indices = @transform_2, window_bounds = array<i64: 1, 128>}, {pipeline_mode = #tpu.pipeline_mode<synchronous>, transform_indices = @transform_3, window_bounds = array<i64: 128, 128>}, {pipeline_mode = #tpu.pipeline_mode<synchronous>, transform_indices = @transform_4, window_bounds = array<i64: 1, 128>}, {pipeline_mode = #tpu.pipeline_mode<synchronous>, transform_indices = @transform_5, window_bounds = array<i64: 1, 128>}, {pipeline_mode = #tpu.pipeline_mode<synchronous>, transform_indices = @transform_6, window_bounds = array<i64: 1, 1>}, {transform_indices = @transform_7, window_bounds = array<i64: 104, 1>}]} {
    %c0 = arith.constant 0 : index
    %c0_0 = arith.constant 0 : index
    %0 = vector.load %arg1[%c0, %c0_0] : memref<104x8xf32, #tpu.memory_space<vmem>>, vector<104x8xf32>
    %c0_1 = arith.constant 0 : index
    %c0_2 = arith.constant 0 : index
    %1 = vector.load %arg2[%c0_1, %c0_2] : memref<8x128xf32, #tpu.memory_space<vmem>>, vector<8x128xf32>
    %cst = arith.constant dense<0.000000e+00> : vector<104x128xf32>
    %2 = tpu.matmul %0, %1, %cst {dimension_numbers = #tpu.dot_dimension_numbers<[1], [0], [0], [1], [0, 0, 1, 1], [], []>} : vector<104x8xf32>, vector<8x128xf32>, vector<104x128xf32> -> vector<104x128xf32>
    %c0_3 = arith.constant 0 : index
    %c0_4 = arith.constant 0 : index
    %3 = vector.load %arg3[%c0_3, %c0_4] : memref<1x128xf32, #tpu.memory_space<vmem>>, vector<1x128xf32>
    %4 = vector.broadcast %3 : vector<1x128xf32> to vector<104x128xf32>
    %5 = arith.addf %2, %4 : vector<104x128xf32>
    %cst_5 = arith.constant 0.000000e+00 : f32
    %6 = vector.broadcast %cst_5 : f32 to vector<104x128xf32>
    %7 = arith.maximumf %5, %6 : vector<104x128xf32>
    %c0_6 = arith.constant 0 : index
    %c0_7 = arith.constant 0 : index
    %8 = vector.load %arg4[%c0_6, %c0_7] : memref<128x128xf32, #tpu.memory_space<vmem>>, vector<128x128xf32>
    %cst_8 = arith.constant dense<0.000000e+00> : vector<104x128xf32>
    %9 = tpu.matmul %7, %8, %cst_8 {dimension_numbers = #tpu.dot_dimension_numbers<[1], [0], [0], [1], [0, 0, 1, 1], [], []>} : vector<104x128xf32>, vector<128x128xf32>, vector<104x128xf32> -> vector<104x128xf32>
    %c0_9 = arith.constant 0 : index
    %c0_10 = arith.constant 0 : index
    %10 = vector.load %arg5[%c0_9, %c0_10] : memref<1x128xf32, #tpu.memory_space<vmem>>, vector<1x128xf32>
    %11 = vector.broadcast %10 : vector<1x128xf32> to vector<104x128xf32>
    %12 = arith.addf %9, %11 : vector<104x128xf32>
    %cst_11 = arith.constant 0.000000e+00 : f32
    %13 = vector.broadcast %cst_11 : f32 to vector<104x128xf32>
    %14 = arith.maximumf %12, %13 : vector<104x128xf32>
    %c0_12 = arith.constant 0 : index
    %c0_13 = arith.constant 0 : index
    %15 = vector.load %arg6[%c0_12, %c0_13] : memref<1x128xf32, #tpu.memory_space<vmem>>, vector<1x128xf32>
    %16 = vector.broadcast %15 : vector<1x128xf32> to vector<104x128xf32>
    %17 = arith.mulf %14, %16 : vector<104x128xf32>
    %cst_14 = arith.constant dense<0.000000e+00> : vector<104xf32>
    %18 = vector.multi_reduction <add>, %17, %cst_14 [1] : vector<104x128xf32> to vector<104xf32>
    %19 = vector.shape_cast %18 : vector<104xf32> to vector<104x1xf32>
    %c0_15 = arith.constant 0 : index
    %c0_16 = arith.constant 0 : index
    %20 = vector.load %arg7[%c0_15, %c0_16] : memref<1x1xf32, #tpu.memory_space<vmem>>, vector<1x1xf32>
    %21 = vector.broadcast %20 : vector<1x1xf32> to vector<104x1xf32>
    %22 = arith.addf %19, %21 : vector<104x1xf32>
    %c0_17 = arith.constant 0 : index
    %c0_18 = arith.constant 0 : index
    %23 = vector.load %arg8[%c0_17, %c0_18] : memref<104x1xf32, #tpu.memory_space<vmem>>, vector<104x1xf32>
    tpu.vector_store %arg8[%c0_17, %c0_18], %22 {strides = array<i32>} : memref<104x1xf32, #tpu.memory_space<vmem>>, vector<104x1xf32>,
    return
  }
  func.func @transform_0(%arg0: i32) -> (i32, i32) {
    %c0_i32 = arith.constant 0 : i32
    %c0_i32_0 = arith.constant 0 : i32
    return %arg0, %c0_i32 : i32, i32
  }
  func.func @transform_1(%arg0: i32) -> (i32, i32) {
    %c0_i32 = arith.constant 0 : i32
    %c0_i32_0 = arith.constant 0 : i32
    %c0_i32_1 = arith.constant 0 : i32
    return %c0_i32, %c0_i32_0 : i32, i32
  }
  func.func @transform_2(%arg0: i32) -> (i32, i32) {
    %c0_i32 = arith.constant 0 : i32
    %c0_i32_0 = arith.constant 0 : i32
    %c0_i32_1 = arith.constant 0 : i32
    return %c0_i32, %c0_i32_0 : i32, i32
  }
  func.func @transform_3(%arg0: i32) -> (i32, i32) {
    %c0_i32 = arith.constant 0 : i32
    %c0_i32_0 = arith.constant 0 : i32
    %c0_i32_1 = arith.constant 0 : i32
    return %c0_i32, %c0_i32_0 : i32, i32
  }
  func.func @transform_4(%arg0: i32) -> (i32, i32) {
    %c0_i32 = arith.constant 0 : i32
    %c0_i32_0 = arith.constant 0 : i32
    %c0_i32_1 = arith.constant 0 : i32
    return %c0_i32, %c0_i32_0 : i32, i32
  }
  func.func @transform_5(%arg0: i32) -> (i32, i32) {
    %c0_i32 = arith.constant 0 : i32
    %c0_i32_0 = arith.constant 0 : i32
    %c0_i32_1 = arith.constant 0 : i32
    return %c0_i32, %c0_i32_0 : i32, i32
  }
  func.func @transform_6(%arg0: i32) -> (i32, i32) {
    %c0_i32 = arith.constant 0 : i32
    %c0_i32_0 = arith.constant 0 : i32
    %c0_i32_1 = arith.constant 0 : i32
    return %c0_i32, %c0_i32_0 : i32, i32
  }
  func.func @transform_7(%arg0: i32) -> (i32, i32) {
    %c0_i32 = arith.constant 0 : i32
    %c0_i32_0 = arith.constant 0 : i32
    return %arg0, %c0_i32 : i32, i32
  }
}

</mosaic_0001>

<llo_original>
// kernel: critic_net_forward.1
$region0: #{critic_net_forward.1}
  #allocation0 [shape = 'u32[]', space=smem, size = 0x4, offset = 0x4, fixed_abs, tag = 'smem constant byte address 0x4 - core index']
  #allocation1 [shape = 'u32[144,128]{1,0:T(1,128)}', space=vmem, size = 0x12000, scoped, tag = 'internal scratch']
  #allocation2 [shape = 'f32[1,1]{1,0:T(1,128)S(1)}', space=vmem, size = 0x200, scoped, tag = 'scoped memory for critic_net_forward.1']
  %s0 = inlined_call_operand.vmem [shape: f32[208,8], index: 0, kind: input, shape index: {}]
  %s1 = inlined_call_operand.vmem [shape: f32[8,128], index: 1, kind: input, shape index: {}]
  %s2 = inlined_call_operand.vmem [shape: f32[1,128], index: 2, kind: input, shape index: {}]
  %s3 = inlined_call_operand.vmem [shape: f32[128,128], index: 3, kind: input, shape index: {}]
  %s4 = inlined_call_operand.vmem [shape: f32[1,128], index: 4, kind: input, shape index: {}]
  %s5 = inlined_call_operand.vmem [shape: f32[1,128], index: 5, kind: input, shape index: {}]
  %s6 = inlined_call_operand.<no memory space> [shape: f32[1,1], index: 6, kind: input, shape index: {}]
  %s7 = inlined_call_operand.vmem [shape: f32[208,1], index: 7, kind: output, shape index: {}]
  %s8 = sld [smem:[#allocation0]]
  $region61: #{critic_net_forward.1} parent=0
    _
  %s10 = ssub.s32 1, %s8
  %s11 = scalar_select 0, %s10, %s8
  %v12 = vstv %s6
  %13 = vst [vmem:[#allocation2] sm:$0x1] %v12
  loop: start=0, step=1, limit=4
  $region2: #{critic_net_forward.1} parent=0 // loop_pre_header
    _
  $region3: #{critic_net_forward.1} parent=0 // loop_header
    %s15 = sphi 0, %s19
    %p16 = scmp.ge.s32.totalorder %s15, 4
    %s25 = sphi 0, %s27
    %s28 = sphi 0, %s25
    %s29 = sphi 0, %s28
    %s45 = sphi 0, %s29
    %s49 = sphi 0, %s49
    %s51 = sphi 0, %s49
    %s52 = sphi 0, %s51
    %s66 = sphi 0, %s52
    %s70 = sphi 0, %s70
    %s72 = sphi 0, %s70
    %s73 = sphi 0, %s72
    %s87 = sphi 0, %s73
    %s91 = sphi 0, %s91
    %s93 = sphi 0, %s91
    %s94 = sphi 0, %s93
    %s108 = sphi 0, %s94
    %s112 = sphi 0, %s112
    %s114 = sphi 0, %s112
    %s115 = sphi 0, %s114
    %s129 = sphi 0, %s115
    %s133 = sphi 0, %s133
    %s135 = sphi 0, %s133
    %s136 = sphi 0, %s135
    %s150 = sphi 0, %s136
    %s154 = sphi 0, %s154
    %s156 = sphi 0, %s154
    %s157 = sphi 0, %s156
    %s171 = sphi 0, %s157
    %s177 = sphi 0, %s179
    %s180 = sphi 0, %s177
    %s181 = sphi 0, %s180
    %s197 = sphi 0, %s181
  $region4: #{critic_net_forward.1} parent=0 // loop_header_branch
    %18 = sbr.rel (%p16) target = $region8
  $region5: #{critic_net_forward.1} parent=0 // loop_body
    %s20 = ssub.s32 %s15, 1
    %s21 = ssub.s32 %s15, 2
    %s22 = sadd.s32 %s15, 1
    %s23 = ssub.s32 %s15, %s22
    %p24 = scmp.eq.s32.totalorder %s23, 0
    %s26 = sadd.s32 %s25, 1
    %s27 = scalar_select %p24, %s25, %s26
    %p30 = pneg %p24
    %p31 = scmp.eq.s32.totalorder %s15, 1
    %p32 = por %p30, %p31
    %p33 = scmp.ne.s32.totalorder %s25, %s28
    %p34 = scmp.eq.s32.totalorder %s15, 0
    %p35 = por %p33, %p34
    %p36 = scmp.ne.s32.totalorder %s25, %s28
    %p37 = scmp.eq.s32.totalorder %s20, 1
    %p38 = por %p36, %p37
    %p39 = scmp.ne.s32.totalorder %s28, %s29
    %p40 = scmp.eq.s32.totalorder %s20, 0
    %p41 = por %p39, %p40
    %p42 = scmp.ne.s32.totalorder %s28, %s29
    %p43 = scmp.eq.s32.totalorder %s21, 1
    %p44 = por %p42, %p43
    %p46 = scmp.ne.s32.totalorder %s29, %s45
    %p47 = scmp.eq.s32.totalorder %s21, 0
    %p48 = por %p46, %p47
    %s50 = sadd.s32 %s49, 1
    %p53 = scmp.eq.s32.totalorder %s15, 1
    %p54 = scmp.ne.s32.totalorder %s49, %s51
    %p55 = scmp.eq.s32.totalorder %s15, 0
    %p56 = por %p54, %p55
    %p57 = scmp.ne.s32.totalorder %s49, %s51
    %p58 = scmp.eq.s32.totalorder %s20, 1
    %p59 = por %p57, %p58
    %p60 = scmp.ne.s32.totalorder %s51, %s52
    %p61 = scmp.eq.s32.totalorder %s20, 0
    %p62 = por %p60, %p61
    %p63 = scmp.ne.s32.totalorder %s51, %s52
    %p64 = scmp.eq.s32.totalorder %s21, 1
    %p65 = por %p63, %p64
    %p67 = scmp.ne.s32.totalorder %s52, %s66
    %p68 = scmp.eq.s32.totalorder %s21, 0
    %p69 = por %p67, %p68
    %s71 = sadd.s32 %s70, 1
    %p74 = scmp.eq.s32.totalorder %s15, 1
    %p75 = scmp.ne.s32.totalorder %s70, %s72
    %p76 = scmp.eq.s32.totalorder %s15, 0
    %p77 = por %p75, %p76
    %p78 = scmp.ne.s32.totalorder %s70, %s72
    %p79 = scmp.eq.s32.totalorder %s20, 1
    %p80 = por %p78, %p79
    %p81 = scmp.ne.s32.totalorder %s72, %s73
    %p82 = scmp.eq.s32.totalorder %s20, 0
    %p83 = por %p81, %p82
    %p84 = scmp.ne.s32.totalorder %s72, %s73
    %p85 = scmp.eq.s32.totalorder %s21, 1
    %p86 = por %p84, %p85
    %p88 = scmp.ne.s32.totalorder %s73, %s87
    %p89 = scmp.eq.s32.totalorder %s21, 0
    %p90 = por %p88, %p89
    %s92 = sadd.s32 %s91, 1
    %p95 = scmp.eq.s32.totalorder %s15, 1
    %p96 = scmp.ne.s32.totalorder %s91, %s93
    %p97 = scmp.eq.s32.totalorder %s15, 0
    %p98 = por %p96, %p97
    %p99 = scmp.ne.s32.totalorder %s91, %s93
    %p100 = scmp.eq.s32.totalorder %s20, 1
    %p101 = por %p99, %p100
    %p102 = scmp.ne.s32.totalorder %s93, %s94
    %p103 = scmp.eq.s32.totalorder %s20, 0
    %p104 = por %p102, %p103
    %p105 = scmp.ne.s32.totalorder %s93, %s94
    %p106 = scmp.eq.s32.totalorder %s21, 1
    %p107 = por %p105, %p106
    %p109 = scmp.ne.s32.totalorder %s94, %s108
    %p110 = scmp.eq.s32.totalorder %s21, 0
    %p111 = por %p109, %p110
    %s113 = sadd.s32 %s112, 1
    %p116 = scmp.eq.s32.totalorder %s15, 1
    %p117 = scmp.ne.s32.totalorder %s112, %s114
    %p118 = scmp.eq.s32.totalorder %s15, 0
    %p119 = por %p117, %p118
    %p120 = scmp.ne.s32.totalorder %s112, %s114
    %p121 = scmp.eq.s32.totalorder %s20, 1
    %p122 = por %p120, %p121
    %p123 = scmp.ne.s32.totalorder %s114, %s115
    %p124 = scmp.eq.s32.totalorder %s20, 0
    %p125 = por %p123, %p124
    %p126 = scmp.ne.s32.totalorder %s114, %s115
    %p127 = scmp.eq.s32.totalorder %s21, 1
    %p128 = por %p126, %p127
    %p130 = scmp.ne.s32.totalorder %s115, %s129
    %p131 = scmp.eq.s32.totalorder %s21, 0
    %p132 = por %p130, %p131
    %s134 = sadd.s32 %s133, 1
    %p137 = scmp.eq.s32.totalorder %s15, 1
    %p138 = scmp.ne.s32.totalorder %s133, %s135
    %p139 = scmp.eq.s32.totalorder %s15, 0
    %p140 = por %p138, %p139
    %p141 = scmp.ne.s32.totalorder %s133, %s135
    %p142 = scmp.eq.s32.totalorder %s20, 1
    %p143 = por %p141, %p142
    %p144 = scmp.ne.s32.totalorder %s135, %s136
    %p145 = scmp.eq.s32.totalorder %s20, 0
    %p146 = por %p144, %p145
    %p147 = scmp.ne.s32.totalorder %s135, %s136
    %p148 = scmp.eq.s32.totalorder %s21, 1
    %p149 = por %p147, %p148
    %p151 = scmp.ne.s32.totalorder %s136, %s150
    %p152 = scmp.eq.s32.totalorder %s21, 0
    %p153 = por %p151, %p152
    %s155 = sadd.s32 %s154, 1
    %p158 = scmp.eq.s32.totalorder %s15, 1
    %p159 = scmp.ne.s32.totalorder %s154, %s156
    %p160 = scmp.eq.s32.totalorder %s15, 0
    %p161 = por %p159, %p160
    %p162 = scmp.ne.s32.totalorder %s154, %s156
    %p163 = scmp.eq.s32.totalorder %s20, 1
    %p164 = por %p162, %p163
    %p165 = scmp.ne.s32.totalorder %s156, %s157
    %p166 = scmp.eq.s32.totalorder %s20, 0
    %p167 = por %p165, %p166
    %p168 = scmp.ne.s32.totalorder %s156, %s157
    %p169 = scmp.eq.s32.totalorder %s21, 1
    %p170 = por %p168, %p169
    %p172 = scmp.ne.s32.totalorder %s157, %s171
    %p173 = scmp.eq.s32.totalorder %s21, 0
    %p174 = por %p172, %p173
    %s175 = ssub.s32 %s15, %s22
    %p176 = scmp.eq.s32.totalorder %s175, 0
    %s178 = sadd.s32 %s177, 1
    %s179 = scalar_select %p176, %s177, %s178
    %p182 = pneg %p176
    %p183 = scmp.eq.s32.totalorder %s15, 1
    %p184 = por %p182, %p183
    %p185 = scmp.ne.s32.totalorder %s177, %s180
    %p186 = scmp.eq.s32.totalorder %s15, 0
    %p187 = por %p185, %p186
    %p188 = scmp.ne.s32.totalorder %s177, %s180
    %p189 = scmp.eq.s32.totalorder %s20, 1
    %p190 = por %p188, %p189
    %p191 = scmp.ne.s32.totalorder %s180, %s181
    %p192 = scmp.eq.s32.totalorder %s20, 0
    %p193 = por %p191, %p192
    %p194 = scmp.ne.s32.totalorder %s180, %s181
    %p195 = scmp.eq.s32.totalorder %s21, 1
    %p196 = por %p194, %p195
    %p198 = scmp.ne.s32.totalorder %s181, %s197
    %p199 = scmp.eq.s32.totalorder %s21, 0
    %p200 = por %p198, %p199
    %p201 = scmp.le.s32.totalorder 1, %s15
    %p202 = scmp.lt.s32.totalorder %s15, 3
    %p203 = pnand %p201, %p202
    %p204 = pneg %p203
    // Predicated region
    $region9: #{critic_net_forward.1} parent=5 // pred_check
      _
    $region10: #{critic_net_forward.1} parent=5 // pred_check_branch
      %206 = sbr.rel (%p203) target = $region12
    $region11: #{critic_net_forward.1} parent=5 // pred_region
      %s207 = ssub.s32 %s15, 1
      // Predicated region
      $region13: #{critic_net_forward.1} parent=11 // pred_check
        %p208 = pneg %p62
      $region14: #{critic_net_forward.1} parent=11 // pred_check_branch
        %210 = sbr.rel (%p208) target = $region16
      $region15: #{critic_net_forward.1} parent=11 // pred_region
        _
      $region16: #{critic_net_forward.1} parent=11 // pred_fallthru
        _
      // Predicated region
      $region17: #{critic_net_forward.1} parent=11 // pred_check
        %p211 = pneg %p83
      $region18: #{critic_net_forward.1} parent=11 // pred_check_branch
        %213 = sbr.rel (%p211) target = $region20
      $region19: #{critic_net_forward.1} parent=11 // pred_region
        _
      $region20: #{critic_net_forward.1} parent=11 // pred_fallthru
        _
      // Predicated region
      $region21: #{critic_net_forward.1} parent=11 // pred_check
        %p214 = pneg %p104
      $region22: #{critic_net_forward.1} parent=11 // pred_check_branch
        %216 = sbr.rel (%p214) target = $region24
      $region23: #{critic_net_forward.1} parent=11 // pred_region
        _
      $region24: #{critic_net_forward.1} parent=11 // pred_fallthru
        _
      // Predicated region
      $region25: #{critic_net_forward.1} parent=11 // pred_check
        %p217 = pneg %p125
      $region26: #{critic_net_forward.1} parent=11 // pred_check_branch
        %219 = sbr.rel (%p217) target = $region28
      $region27: #{critic_net_forward.1} parent=11 // pred_region
        _
      $region28: #{critic_net_forward.1} parent=11 // pred_fallthru
        _
      // Predicated region
      $region29: #{critic_net_forward.1} parent=11 // pred_check
        %p220 = pneg %p146
      $region30: #{critic_net_forward.1} parent=11 // pred_check_branch
        %222 = sbr.rel (%p220) target = $region32
      $region31: #{critic_net_forward.1} parent=11 // pred_region
        _
      $region32: #{critic_net_forward.1} parent=11 // pred_fallthru
        _
      // Predicated region
      $region33: #{critic_net_forward.1} parent=11 // pred_check
        %p223 = pneg %p167
      $region34: #{critic_net_forward.1} parent=11 // pred_check_branch
        %225 = sbr.rel (%p223) target = $region36
      $region35: #{critic_net_forward.1} parent=11 // pred_region
        _
      $region36: #{critic_net_forward.1} parent=11 // pred_fallthru
        _
    $region12: #{critic_net_forward.1} parent=5 // pred_fallthru
      _
    %p226 = scmp.lt.s32.totalorder %s15, 2
    // Predicated region
    $region37: #{critic_net_forward.1} parent=5 // pred_check
      %p227 = pneg %p226
    $region38: #{critic_net_forward.1} parent=5 // pred_check_branch
      %229 = sbr.rel (%p227) target = $region40
    $region39: #{critic_net_forward.1} parent=5 // pred_region
      // Predicated region
      $region41: #{critic_net_forward.1} parent=39 // pred_check
        %p230 = pneg %p35
      $region42: #{critic_net_forward.1} parent=39 // pred_check_branch
        %232 = sbr.rel (%p230) target = $region44
      $region43: #{critic_net_forward.1} parent=39 // pred_region
        %s233 = smul.u32 13, %s15
        %p234 = scmp.lt.s32.totalorder %s233, 25
        %s235 = scalar_select %p234, %s233, 25
        %s236 = smul.addr %s235, 8
        %s237 = scalar_lea.vmem %s0, %s236
        %s238 = smul.u32 13, %s15
      $region44: #{critic_net_forward.1} parent=39 // pred_fallthru
        _
    $region40: #{critic_net_forward.1} parent=5 // pred_fallthru
      _
    %p239 = scmp.le.s32.totalorder 1, %s15
    %p240 = scmp.lt.s32.totalorder %s15, 3
    %p241 = pnand %p239, %p240
    %p242 = pneg %p241
    // Predicated region
    $region45: #{critic_net_forward.1} parent=5 // pred_check
      _
    $region46: #{critic_net_forward.1} parent=5 // pred_check_branch
      %244 = sbr.rel (%p241) target = $region48
    $region47: #{critic_net_forward.1} parent=5 // pred_region
      %s245 = ssub.s32 %s15, 1
      %s246 = smul.u32 13, %s20
      %p247 = scmp.lt.s32.totalorder %s246, 25
      %s248 = scalar_select %p247, %s246, 25
      %s249 = smul.addr %s248, 8
      %s250 = scalar_lea.vmem %s0, %s249
      %p251 = pneg %p41
      %p252 = pneg %p38
      %p253 = pneg %p62
      %p254 = pneg %p59
      %p255 = pneg %p83
      %p256 = pneg %p80
      %p257 = pneg %p104
      %p258 = pneg %p101
      %p259 = pneg %p125
      %p260 = pneg %p122
      %p261 = pneg %p146
      %p262 = pneg %p143
      %p263 = pneg %p167
      %p264 = pneg %p164
      %p265 = pneg %p193
      %p266 = pneg %p190
      %s267 = smul.u32 13, %s20
      %p268 = scmp.lt.s32.totalorder %s267, 25
      %s269 = scalar_select %p268, %s267, 25
      %s270 = smul.addr %s269, 8
      %s271 = scalar_lea.vmem %s7, %s270
      %s272 = smul.u32 13, %s20
      %p273 = scmp.lt.s32.totalorder %s272, 25
      %s274 = scalar_select %p273, %s272, 25
      %s275 = smul.addr %s274, 8
      %s276 = scalar_lea.vmem %s0, %s275
      %s277 = smul.u32 13, %s20
      %s278 = smul.u32 13, %s20
      %p279 = scmp.lt.s32.totalorder %s278, 25
      %s280 = scalar_select %p279, %s278, 25
      %s281 = smul.addr %s280, 8
      %s282 = scalar_lea.vmem %s7, %s281
      %s283 = smul.u32 13, %s20
      %v284 = vld [vmem:[%s276] sm:$0xff]
      %v285 = vld [vmem:[%s276 + $0x8] sm:$0xff]
      %v286 = vld [vmem:[%s276 + $0x10] sm:$0xff]
      %v287 = vld [vmem:[%s276 + $0x18] sm:$0xff]
      %v288 = vld [vmem:[%s276 + $0x20] sm:$0xff]
      %v289 = vld [vmem:[%s276 + $0x28] sm:$0xff]
      %v290 = vld [vmem:[%s276 + $0x30] sm:$0xff]
      %v291 = vld [vmem:[%s276 + $0x38] sm:$0xff]
      %v292 = vld [vmem:[%s276 + $0x40] sm:$0xff]
      %v293 = vld [vmem:[%s276 + $0x48] sm:$0xff]
      %v294 = vld [vmem:[%s276 + $0x50] sm:$0xff]
      %v295 = vld [vmem:[%s276 + $0x58] sm:$0xff]
      %v296 = vld [vmem:[%s276 + $0x60] sm:$0xff]
      %v297 = vld [vmem:[%s1] sm:$0xff]
      %v298 = vld [vmem:[%s2] sm:$0x1]
      %v300 = vlaneseq
      %v301 = vshrl.u32 %v300, 7
      %v302 = vsub.s32 0, %v301
      %v303 = vrot.slane %v298, %v302
      %vm305 = vcmask 64512
      %v307 = vsel %vm305, %v284, 0
      %v310 = vsel %vm305, %v285, 0
      %v313 = vsel %vm305, %v286, 0
      %v316 = vsel %vm305, %v287, 0
      %v319 = vsel %vm305, %v288, 0
      %v322 = vsel %vm305, %v289, 0
      %v325 = vsel %vm305, %v290, 0
      %v328 = vsel %vm305, %v291, 0
      %v331 = vsel %vm305, %v292, 0
      %v334 = vsel %vm305, %v293, 0
      %v337 = vsel %vm305, %v294, 0
      %v340 = vsel %vm305, %v295, 0
      %v343 = vsel %vm305, %v296, 0
      %345 = vmatprep.subr.mxu0 0.0
      %346 = vmatpush1.msra.mxu0 0.0
      %347 = vmatprep.subr.mxu0 0.0
      %348 = vmatpush1.msra.mxu0 0.0
      %349 = vmatprep.subr.mxu0 0.0
      %350 = vmatpush1.msra.mxu0 0.0
      %351 = vmatprep.subr.mxu0 0.0
      %352 = vmatpush1.msra.mxu0 0.0
      %353 = vmatprep.subr.mxu0 0.0
      %354 = vmatpush1.msra.mxu0 0.0
      %355 = vmatprep.subr.mxu0 0.0
      %356 = vmatpush1.msra.mxu0 0.0
      %357 = vmatprep.subr.mxu0 0.0
      %358 = vmatpush1.msra.mxu0 0.0
      %359 = vmatprep.subr.mxu0 0.0
      %360 = vmatpush1.msra.mxu0 0.0
      %361 = vmatprep.subr.mxu0 0.0
      %362 = vmatpush1.msra.mxu0 0.0
      %363 = vmatprep.subr.mxu0 0.0
      %364 = vmatpush1.msra.mxu0 0.0
      %365 = vmatprep.subr.mxu0 0.0
      %366 = vmatpush1.msra.mxu0 0.0
      %367 = vmatprep.subr.mxu0 0.0
      %368 = vmatpush1.msra.mxu0 0.0
      %369 = vmatprep.subr.mxu0 0.0
      %370 = vmatpush1.msra.mxu0 0.0
      %371 = vmatprep.subr.mxu0 0.0
      %372 = vmatpush1.msra.mxu0 0.0
      %373 = vmatprep.subr.mxu0 0.0
      %374 = vmatpush1.msra.mxu0 0.0
      %375 = vmatprep.subr.mxu0 0.0
      %376 = vmatpush1.msra.mxu0 %v297
      %377 = vmatprep.subr.mxu0 0.0
      %378 = vmatpush2.msra.mxu0 0.0
      %379 = vmatprep.subr.mxu0 0.0
      %380 = vmatpush2.msra.mxu0 0.0
      %381 = vmatprep.subr.mxu0 0.0
      %382 = vmatpush2.msra.mxu0 0.0
      %383 = vmatprep.subr.mxu0 0.0
      %384 = vmatpush2.msra.mxu0 0.0
      %385 = vmatprep.subr.mxu0 0.0
      %386 = vmatpush2.msra.mxu0 0.0
      %387 = vmatprep.subr.mxu0 0.0
      %388 = vmatpush2.msra.mxu0 0.0
      %389 = vmatprep.subr.mxu0 0.0
      %390 = vmatpush2.msra.mxu0 0.0
      %391 = vmatprep.subr.mxu0 0.0
      %392 = vmatpush2.msra.mxu0 0.0
      %393 = vmatprep.subr.mxu0 0.0
      %394 = vmatpush2.msra.mxu0 0.0
      %395 = vmatprep.subr.mxu0 0.0
      %396 = vmatpush2.msra.mxu0 0.0
      %397 = vmatprep.subr.mxu0 0.0
      %398 = vmatpush2.msra.mxu0 0.0
      %399 = vmatprep.subr.mxu0 0.0
      %400 = vmatpush2.msra.mxu0 0.0
      %401 = vmatprep.subr.mxu0 0.0
      %402 = vmatpush2.msra.mxu0 0.0
      %403 = vmatprep.subr.mxu0 0.0
      %404 = vmatpush2.msra.mxu0 0.0
      %405 = vmatprep.subr.mxu0 0.0
      %406 = vmatpush2.msra.mxu0 0.0
      %407 = vmatprep.subr.mxu0 0.0
      %408 = vmatpush2.msra.mxu0 0.0
      %409 = vmatprep.mubr.f32.mxu0 0.0
      %410 = vmatmul.mubr.f32.gmra.mxu0 %v307
      %v411 = vpop.f32.mrf.mxu0
      %v412 = vadd.f32 %v303, %v411
      %v413 = vpop.f32.mrf.mxu0
      %414 = vmatprep.mubr.f32.mxu0 0.0
      %415 = vmatmul.mubr.f32.gmra.mxu0 %v310
      %v416 = vpop.f32.mrf.mxu0
      %v417 = vadd.f32 %v303, %v416
      %v418 = vpop.f32.mrf.mxu0
      %419 = vmatprep.mubr.f32.mxu0 0.0
      %420 = vmatmul.mubr.f32.gmra.mxu0 %v313
      %v421 = vpop.f32.mrf.mxu0
      %v422 = vadd.f32 %v303, %v421
      %v423 = vpop.f32.mrf.mxu0
      %424 = vmatprep.mubr.f32.mxu0 0.0
      %425 = vmatmul.mubr.f32.gmra.mxu0 %v316
      %v426 = vpop.f32.mrf.mxu0
      %v427 = vadd.f32 %v303, %v426
      %v428 = vpop.f32.mrf.mxu0
      %429 = vmatprep.mubr.f32.mxu0 0.0
      %430 = vmatmul.mubr.f32.gmra.mxu0 %v319
      %v431 = vpop.f32.mrf.mxu0
      %v432 = vadd.f32 %v303, %v431
      %v433 = vpop.f32.mrf.mxu0
      %434 = vmatprep.mubr.f32.mxu0 0.0
      %435 = vmatmul.mubr.f32.gmra.mxu0 %v322
      %v436 = vpop.f32.mrf.mxu0
      %v437 = vadd.f32 %v303, %v436
      %v438 = vpop.f32.mrf.mxu0
      %439 = vmatprep.mubr.f32.mxu0 0.0
      %440 = vmatmul.mubr.f32.gmra.mxu0 %v325
      %v441 = vpop.f32.mrf.mxu0
      %v442 = vadd.f32 %v303, %v441
      %v443 = vpop.f32.mrf.mxu0
      %444 = vmatprep.mubr.f32.mxu0 0.0
      %445 = vmatmul.mubr.f32.gmra.mxu0 %v328
      %v446 = vpop.f32.mrf.mxu0
      %v447 = vadd.f32 %v303, %v446
      %v448 = vpop.f32.mrf.mxu0
      %449 = vmatprep.mubr.f32.mxu0 0.0
      %450 = vmatmul.mubr.f32.gmra.mxu0 %v331
      %v451 = vpop.f32.mrf.mxu0
      %v452 = vadd.f32 %v303, %v451
      %v453 = vpop.f32.mrf.mxu0
      %454 = vmatprep.mubr.f32.mxu0 0.0
      %455 = vmatmul.mubr.f32.gmra.mxu0 %v334
      %v456 = vpop.f32.mrf.mxu0
      %v457 = vadd.f32 %v303, %v456
      %v458 = vpop.f32.mrf.mxu0
      %459 = vmatprep.mubr.f32.mxu0 0.0
      %460 = vmatmul.mubr.f32.gmra.mxu0 %v337
      %v461 = vpop.f32.mrf.mxu0
      %v462 = vadd.f32 %v303, %v461
      %v463 = vpop.f32.mrf.mxu0
      %464 = vmatprep.mubr.f32.mxu0 0.0
      %465 = vmatmul.mubr.f32.gmra.mxu0 %v340
      %v466 = vpop.f32.mrf.mxu0
      %v467 = vadd.f32 %v303, %v466
      %v468 = vpop.f32.mrf.mxu0
      %469 = vmatprep.mubr.f32.mxu0 0.0
      %470 = vmatmul.mubr.f32.gmra.mxu0 %v343
      %v471 = vpop.f32.mrf.mxu0
      %v472 = vadd.f32 %v303, %v471
      %v473 = vpop.f32.mrf.mxu0
      %474 = vdwg.mxu0
      %v475 = vmax.f32 %v412, 0.0
      %v476 = vmax.f32 %v417, 0.0
      %v477 = vmax.f32 %v422, 0.0
      %v478 = vmax.f32 %v427, 0.0
      %v479 = vmax.f32 %v432, 0.0
      %v480 = vmax.f32 %v437, 0.0
      %v481 = vmax.f32 %v442, 0.0
      %v482 = vmax.f32 %v447, 0.0
      %v483 = vmax.f32 %v452, 0.0
      %v484 = vmax.f32 %v457, 0.0
      %v485 = vmax.f32 %v462, 0.0
      %v486 = vmax.f32 %v467, 0.0
      %v487 = vmax.f32 %v472, 0.0
      %v488 = vld [vmem:[%s3] sm:$0xff]
      %v489 = vld [vmem:[%s3 + $0x8] sm:$0xff]
      %v490 = vld [vmem:[%s3 + $0x10] sm:$0xff]
      %v491 = vld [vmem:[%s3 + $0x18] sm:$0xff]
      %v492 = vld [vmem:[%s3 + $0x20] sm:$0xff]
      %v493 = vld [vmem:[%s3 + $0x28] sm:$0xff]
      %v494 = vld [vmem:[%s3 + $0x30] sm:$0xff]
      %v495 = vld [vmem:[%s3 + $0x38] sm:$0xff]
      %v496 = vld [vmem:[%s3 + $0x40] sm:$0xff]
      %v497 = vld [vmem:[%s3 + $0x48] sm:$0xff]
      %v498 = vld [vmem:[%s3 + $0x50] sm:$0xff]
      %v499 = vld [vmem:[%s3 + $0x58] sm:$0xff]
      %v500 = vld [vmem:[%s3 + $0x60] sm:$0xff]
      %v501 = vld [vmem:[%s3 + $0x68] sm:$0xff]
      %v502 = vld [vmem:[%s3 + $0x70] sm:$0xff]
      %v503 = vld [vmem:[%s3 + $0x78] sm:$0xff]
      %v504 = vld [vmem:[%s4] sm:$0x1]
      %v506 = vlaneseq
      %v507 = vshrl.u32 %v506, 7
      %v508 = vsub.s32 0, %v507
      %v509 = vrot.slane %v504, %v508
      %511 = vmatprep.subr.mxu0 0.0
      %512 = vmatpush1.msra.mxu0 %v503
      %513 = vmatprep.subr.mxu0 0.0
      %514 = vmatpush1.msra.mxu0 %v502
      %515 = vmatprep.subr.mxu0 0.0
      %516 = vmatpush1.msra.mxu0 %v501
      %517 = vmatprep.subr.mxu0 0.0
      %518 = vmatpush1.msra.mxu0 %v500
      %519 = vmatprep.subr.mxu0 0.0
      %520 = vmatpush1.msra.mxu0 %v499
      %521 = vmatprep.subr.mxu0 0.0
      %522 = vmatpush1.msra.mxu0 %v498
      %523 = vmatprep.subr.mxu0 0.0
      %524 = vmatpush1.msra.mxu0 %v497
      %525 = vmatprep.subr.mxu0 0.0
      %526 = vmatpush1.msra.mxu0 %v496
      %527 = vmatprep.subr.mxu0 0.0
      %528 = vmatpush1.msra.mxu0 %v495
      %529 = vmatprep.subr.mxu0 0.0
      %530 = vmatpush1.msra.mxu0 %v494
      %531 = vmatprep.subr.mxu0 0.0
      %532 = vmatpush1.msra.mxu0 %v493
      %533 = vmatprep.subr.mxu0 0.0
      %534 = vmatpush1.msra.mxu0 %v492
      %535 = vmatprep.subr.mxu0 0.0
      %536 = vmatpush1.msra.mxu0 %v491
      %537 = vmatprep.subr.mxu0 0.0
      %538 = vmatpush1.msra.mxu0 %v490
      %539 = vmatprep.subr.mxu0 0.0
      %540 = vmatpush1.msra.mxu0 %v489
      %541 = vmatprep.subr.mxu0 0.0
      %542 = vmatpush1.msra.mxu0 %v488
      %543 = vmatprep.subr.mxu0 0.0
      %544 = vmatpush2.msra.mxu0 0.0
      %545 = vmatprep.subr.mxu0 0.0
      %546 = vmatpush2.msra.mxu0 0.0
      %547 = vmatprep.subr.mxu0 0.0
      %548 = vmatpush2.msra.mxu0 0.0
      %549 = vmatprep.subr.mxu0 0.0
      %550 = vmatpush2.msra.mxu0 0.0
      %551 = vmatprep.subr.mxu0 0.0
      %552 = vmatpush2.msra.mxu0 0.0
      %553 = vmatprep.subr.mxu0 0.0
      %554 = vmatpush2.msra.mxu0 0.0
      %555 = vmatprep.subr.mxu0 0.0
      %556 = vmatpush2.msra.mxu0 0.0
      %557 = vmatprep.subr.mxu0 0.0
      %558 = vmatpush2.msra.mxu0 0.0
      %559 = vmatprep.subr.mxu0 0.0
      %560 = vmatpush2.msra.mxu0 0.0
      %561 = vmatprep.subr.mxu0 0.0
      %562 = vmatpush2.msra.mxu0 0.0
      %563 = vmatprep.subr.mxu0 0.0
      %564 = vmatpush2.msra.mxu0 0.0
      %565 = vmatprep.subr.mxu0 0.0
      %566 = vmatpush2.msra.mxu0 0.0
      %567 = vmatprep.subr.mxu0 0.0
      %568 = vmatpush2.msra.mxu0 0.0
      %569 = vmatprep.subr.mxu0 0.0
      %570 = vmatpush2.msra.mxu0 0.0
      %571 = vmatprep.subr.mxu0 0.0
      %572 = vmatpush2.msra.mxu0 0.0
      %573 = vmatprep.subr.mxu0 0.0
      %574 = vmatpush2.msra.mxu0 0.0
      %575 = vmatprep.mubr.f32.mxu0 0.0
      %576 = vmatmul.mubr.f32.gmra.mxu0 %v475
      %v577 = vpop.f32.mrf.mxu0
      %v578 = vadd.f32 %v509, %v577
      %v579 = vpop.f32.mrf.mxu0
      %580 = vmatprep.mubr.f32.mxu0 0.0
      %581 = vmatmul.mubr.f32.gmra.mxu0 %v476
      %v582 = vpop.f32.mrf.mxu0
      %v583 = vadd.f32 %v509, %v582
      %v584 = vpop.f32.mrf.mxu0
      %585 = vmatprep.mubr.f32.mxu0 0.0
      %586 = vmatmul.mubr.f32.gmra.mxu0 %v477
      %v587 = vpop.f32.mrf.mxu0
      %v588 = vadd.f32 %v509, %v587
      %v589 = vpop.f32.mrf.mxu0
      %590 = vmatprep.mubr.f32.mxu0 0.0
      %591 = vmatmul.mubr.f32.gmra.mxu0 %v478
      %v592 = vpop.f32.mrf.mxu0
      %v593 = vadd.f32 %v509, %v592
      %v594 = vpop.f32.mrf.mxu0
      %595 = vmatprep.mubr.f32.mxu0 0.0
      %596 = vmatmul.mubr.f32.gmra.mxu0 %v479
      %v597 = vpop.f32.mrf.mxu0
      %v598 = vadd.f32 %v509, %v597
      %v599 = vpop.f32.mrf.mxu0
      %600 = vmatprep.mubr.f32.mxu0 0.0
      %601 = vmatmul.mubr.f32.gmra.mxu0 %v480
      %v602 = vpop.f32.mrf.mxu0
      %v603 = vadd.f32 %v509, %v602
      %v604 = vpop.f32.mrf.mxu0
      %605 = vmatprep.mubr.f32.mxu0 0.0
      %606 = vmatmul.mubr.f32.gmra.mxu0 %v481
      %v607 = vpop.f32.mrf.mxu0
      %v608 = vadd.f32 %v509, %v607
      %v609 = vpop.f32.mrf.mxu0
      %610 = vmatprep.mubr.f32.mxu0 0.0
      %611 = vmatmul.mubr.f32.gmra.mxu0 %v482
      %v612 = vpop.f32.mrf.mxu0
      %v613 = vadd.f32 %v509, %v612
      %v614 = vpop.f32.mrf.mxu0
      %615 = vmatprep.mubr.f32.mxu0 0.0
      %616 = vmatmul.mubr.f32.gmra.mxu0 %v483
      %v617 = vpop.f32.mrf.mxu0
      %v618 = vadd.f32 %v509, %v617
      %v619 = vpop.f32.mrf.mxu0
      %620 = vmatprep.mubr.f32.mxu0 0.0
      %621 = vmatmul.mubr.f32.gmra.mxu0 %v484
      %v622 = vpop.f32.mrf.mxu0
      %v623 = vadd.f32 %v509, %v622
      %v624 = vpop.f32.mrf.mxu0
      %625 = vmatprep.mubr.f32.mxu0 0.0
      %626 = vmatmul.mubr.f32.gmra.mxu0 %v485
      %v627 = vpop.f32.mrf.mxu0
      %v628 = vadd.f32 %v509, %v627
      %v629 = vpop.f32.mrf.mxu0
      %630 = vmatprep.mubr.f32.mxu0 0.0
      %631 = vmatmul.mubr.f32.gmra.mxu0 %v486
      %v632 = vpop.f32.mrf.mxu0
      %v633 = vadd.f32 %v509, %v632
      %v634 = vpop.f32.mrf.mxu0
      %635 = vmatprep.mubr.f32.mxu0 0.0
      %636 = vmatmul.mubr.f32.gmra.mxu0 %v487
      %v637 = vpop.f32.mrf.mxu0
      %v638 = vadd.f32 %v509, %v637
      %v639 = vpop.f32.mrf.mxu0
      %640 = vdwg.mxu0
      %v641 = vmax.f32 %v578, 0.0
      %v642 = vmax.f32 %v583, 0.0
      %v643 = vmax.f32 %v588, 0.0
      %v644 = vmax.f32 %v593, 0.0
      %v645 = vmax.f32 %v598, 0.0
      %v646 = vmax.f32 %v603, 0.0
      %v647 = vmax.f32 %v608, 0.0
      %v648 = vmax.f32 %v613, 0.0
      %v649 = vmax.f32 %v618, 0.0
      %v650 = vmax.f32 %v623, 0.0
      %v651 = vmax.f32 %v628, 0.0
      %v652 = vmax.f32 %v633, 0.0
      %v653 = vmax.f32 %v638, 0.0
      %v654 = vld [vmem:[%s5] sm:$0x1]
      %v656 = vlaneseq
      %v657 = vshrl.u32 %v656, 7
      %v658 = vsub.s32 0, %v657
      %v659 = vrot.slane %v654, %v658
      %v661 = vmul.f32 %v641, %v659
      %v662 = vmul.f32 %v642, %v659
      %v663 = vmul.f32 %v643, %v659
      %v664 = vmul.f32 %v644, %v659
      %v665 = vmul.f32 %v645, %v659
      %v666 = vmul.f32 %v646, %v659
      %v667 = vmul.f32 %v647, %v659
      %v668 = vmul.f32 %v648, %v659
      %v669 = vmul.f32 %v649, %v659
      %v670 = vmul.f32 %v650, %v659
      %v671 = vmul.f32 %v651, %v659
      %v672 = vmul.f32 %v652, %v659
      %v673 = vmul.f32 %v653, %v659
      %674 = vadd.xlane.f32.xlu0 %v661
      %v675 = vpop.xlane.xlu0 %674
      %676 = vadd.xlane.f32.xlu0 %v662
      %v677 = vpop.xlane.xlu0 %676
      %678 = vadd.xlane.f32.xlu0 %v663
      %v679 = vpop.xlane.xlu0 %678
      %680 = vadd.xlane.f32.xlu0 %v664
      %v681 = vpop.xlane.xlu0 %680
      %682 = vadd.xlane.f32.xlu0 %v665
      %v683 = vpop.xlane.xlu0 %682
      %684 = vadd.xlane.f32.xlu0 %v666
      %v685 = vpop.xlane.xlu0 %684
      %686 = vadd.xlane.f32.xlu0 %v667
      %v687 = vpop.xlane.xlu0 %686
      %688 = vadd.xlane.f32.xlu0 %v668
      %v689 = vpop.xlane.xlu0 %688
      %690 = vadd.xlane.f32.xlu0 %v669
      %v691 = vpop.xlane.xlu0 %690
      %692 = vadd.xlane.f32.xlu0 %v670
      %v693 = vpop.xlane.xlu0 %692
      %694 = vadd.xlane.f32.xlu0 %v671
      %v695 = vpop.xlane.xlu0 %694
      %696 = vadd.xlane.f32.xlu0 %v672
      %v697 = vpop.xlane.xlu0 %696
      %698 = vadd.xlane.f32.xlu0 %v673
      %v699 = vpop.xlane.xlu0 %698
      %v700 = vld [vmem:[#allocation2] sm:$0x1]
      %v702 = vlaneseq
      %v703 = vshrl.u32 %v702, 7
      %v704 = vsub.s32 0, %v703
      %v705 = vrot.slane %v700, %v704
      %v707 = vadd.f32 %v675, %v705
      %v708 = vadd.f32 %v677, %v705
      %v709 = vadd.f32 %v679, %v705
      %v710 = vadd.f32 %v681, %v705
      %v711 = vadd.f32 %v683, %v705
      %v712 = vadd.f32 %v685, %v705
      %v713 = vadd.f32 %v687, %v705
      %v714 = vadd.f32 %v689, %v705
      %v715 = vadd.f32 %v691, %v705
      %v716 = vadd.f32 %v693, %v705
      %v717 = vadd.f32 %v695, %v705
      %v718 = vadd.f32 %v697, %v705
      %v719 = vadd.f32 %v699, %v705
      %vm720 = vcmask 7168
      %721 = vst.msk [vmem:[%s282] sm:$0xff] %vm720, %v707
      %722 = vst.msk [vmem:[%s282 + $0x8] sm:$0xff] %vm720, %v708
      %723 = vst.msk [vmem:[%s282 + $0x10] sm:$0xff] %vm720, %v709
      %724 = vst.msk [vmem:[%s282 + $0x18] sm:$0xff] %vm720, %v710
      %725 = vst.msk [vmem:[%s282 + $0x20] sm:$0xff] %vm720, %v711
      %726 = vst.msk [vmem:[%s282 + $0x28] sm:$0xff] %vm720, %v712
      %727 = vst.msk [vmem:[%s282 + $0x30] sm:$0xff] %vm720, %v713
      %728 = vst.msk [vmem:[%s282 + $0x38] sm:$0xff] %vm720, %v714
      %729 = vst.msk [vmem:[%s282 + $0x40] sm:$0xff] %vm720, %v715
      %730 = vst.msk [vmem:[%s282 + $0x48] sm:$0xff] %vm720, %v716
      %731 = vst.msk [vmem:[%s282 + $0x50] sm:$0xff] %vm720, %v717
      %732 = vst.msk [vmem:[%s282 + $0x58] sm:$0xff] %vm720, %v718
      %733 = vst.msk [vmem:[%s282 + $0x60] sm:$0xff] %vm720, %v719
      %s734 = smul.u32 13, %s20
      %p735 = scmp.lt.s32.totalorder %s734, 25
      %s736 = scalar_select %p735, %s734, 25
      %s737 = smul.addr %s736, 8
      %s738 = scalar_lea.vmem %s7, %s737
      // Predicated region
      $region49: #{critic_net_forward.1} parent=47 // pred_check
        %p739 = pneg %p190
      $region50: #{critic_net_forward.1} parent=47 // pred_check_branch
        %741 = sbr.rel (%p739) target = $region52
      $region51: #{critic_net_forward.1} parent=47 // pred_region
        %s742 = smul.u32 13, %s20
      $region52: #{critic_net_forward.1} parent=47 // pred_fallthru
        _
    $region48: #{critic_net_forward.1} parent=5 // pred_fallthru
      _
    %p743 = scmp.le.s32.totalorder 2, %s15
    // Predicated region
    $region53: #{critic_net_forward.1} parent=5 // pred_check
      %p744 = pneg %p743
    $region54: #{critic_net_forward.1} parent=5 // pred_check_branch
      %746 = sbr.rel (%p744) target = $region56
    $region55: #{critic_net_forward.1} parent=5 // pred_region
      %s747 = ssub.s32 %s15, 2
      // Predicated region
      $region57: #{critic_net_forward.1} parent=55 // pred_check
        %p748 = pneg %p196
      $region58: #{critic_net_forward.1} parent=55 // pred_check_branch
        %750 = sbr.rel (%p748) target = $region60
      $region59: #{critic_net_forward.1} parent=55 // pred_region
        %s751 = smul.u32 13, %s21
        %p752 = scmp.lt.s32.totalorder %s751, 25
        %s753 = scalar_select %p752, %s751, 25
        %s754 = smul.addr %s753, 8
        %s755 = scalar_lea.vmem %s7, %s754
      $region60: #{critic_net_forward.1} parent=55 // pred_fallthru
        _
    $region56: #{critic_net_forward.1} parent=5 // pred_fallthru
      _
  $region6: #{critic_net_forward.1} parent=0 // loop_footer
    %s19 = sadd.s32 1, %s15
  $region7: #{critic_net_forward.1} parent=0 // loop_footer_branch
    %14 = sbr.rel target = $region3
  $region8: #{critic_net_forward.1} parent=0 // loop_exit
    _

</llo_original>
